<compile_context>
chip_gen: v7x
topology: tpu7x:2x2x1
jax: 0.10.0
libtpu: 0.0.40
codegen_flags: <defaults>
</compile_context>

<pallas_src>
import functools

import jax
import jax.numpy as jnp
from jax import lax
from jax.experimental import pallas as pl
from jax.experimental.pallas import tpu as pltpu


# ----------------------------------------------------------------------------
# Fused Pallas kernel: whole SPC32 forward for the resident batch.
# ----------------------------------------------------------------------------
def _spc32_fused_kernel(x_ref, w_ref, bn_ref, out_ref, *,
                        n, hwp, hw_valid, eps, compute_dtype):
    """x_ref  : (C+1, N*HWp) f32. Rows 0..C-1 = x, lane block b = [b*HWp,(b+1)*HWp),
                zero in padded lanes. Row C = 1.0 (ones): folds the block-1 conv
                bias into the matmul and gives the softmax row-sum as an extra
                MXU output column in the fk dot.
       w_ref  : (2*D, C+1) f32. Rows [0:D] = [W0 | b0], rows [D:2D] = [W2 | b2]
                (conv3d (7,1,1) pad (3,0,0) written as banded matrices, D=msize*C).
       bn_ref : (C, 4) f32, columns = [gamma1, beta1, gamma2, beta2].
       out_ref: (C, N*HWp) f32, lane-dense, written exactly once."""
    c1, total = x_ref.shape
    c = c1 - 1
    d = w_ref.shape[0] // 2

    x_aug = x_ref[...]                        # (C+1, T) f32 (T = N*HWp)
    xc = x_aug.astype(compute_dtype)          # MXU operand copy
    w_all = w_ref[...]
    bn = bn_ref[...]
    g1, be1 = bn[:, 0:1], bn[:, 1:2]
    g2, be2 = bn[:, 2:3], bn[:, 3:4]
    inv_count = jnp.float32(1.0 / (n * hw_valid))

    # Additive penalty pushing padded lanes of each HWp block to -inf before
    # the softmax (exp underflows to exactly 0). Safe while |pre| << 1e30.
    lane_in_blk = lax.broadcasted_iota(jnp.int32, (1, total), 1) % hwp
    penalty = jnp.where(lane_in_blk < hw_valid,
                        jnp.float32(0.0), jnp.float32(-1e30))

    def spc_attention(pre_b, xc_b):
        # pre_b: (D, HWp) f32 conv pre-activation (+ bias + lane penalty)
        # xc_b : (C+1, HWp) compute-dtype (row C = ones)
        mx = jnp.max(pre_b, axis=-1, keepdims=True)
        ex = jnp.exp(pre_b - mx)                                   # (D, HWp) f32
        exc = ex.astype(compute_dtype)
        # fk AND the softmax row-sum from one MXU dot (the ones row of x turns
        # into the sum column). No transposes: contract the lane axes.
        fk_aug = lax.dot_general(exc, xc_b, (((1,), (1,)), ((), ())),
                                 preferred_element_type=jnp.float32)  # (D, C+1)
        fk = fk_aug[:, :c]                                          # (D, C)
        inv_s = pl.reciprocal(fk_aug[:, c:c + 1], approx=True)      # (D, 1) EUP
        # Deferred softmax normalization (mask = ex / s) + positive homogeneity
        # of leaky_relu:  sum_d leaky(fk_d*mask_d) = sum_d [leaky(fk_raw_d)/s_d^2]*ex_d
        fk = jnp.where(fk > 0, fk, 0.01 * fk) * (inv_s * inv_s)
        # (C, HWp): contract the D axes of both operands -- no transpose.
        return lax.dot_general(fk.astype(compute_dtype), exc,
                               (((0,), (0,)), ((), ())),
                               preferred_element_type=jnp.float32)

    # -------- block 1: one batched W0 matmul (bias folded via ones row) -----
    pre1 = jnp.dot(w_all[:d].astype(compute_dtype), xc,
                   preferred_element_type=jnp.float32) + penalty     # (D, T)
    o1 = []
    # TODO(synk): for large N keep o1/o2 in a VMEM scratch (or chunk the batch
    # over a grid axis with BN partial sums) instead of unrolled locals.
    for bi in range(n):                       # n is small & static -> unrolled
        lo = bi * hwp
        o1.append(spc_attention(pre1[:, lo:lo + hwp], xc[:, lo:lo + hwp]))
    o1_all = jnp.concatenate(o1, axis=-1)     # (C, T)

    # BN1 (train mode, biased variance). Padded lanes of o1 are exactly 0
    # (ex == 0 there), so full-lane sums equal valid-lane sums / (n*hw_valid).
    mean1 = jnp.sum(o1_all, axis=-1, keepdims=True) * inv_count
    var1 = jnp.sum(o1_all * o1_all, axis=-1, keepdims=True) * inv_count - mean1 * mean1
    y2_all = (o1_all - mean1) * (lax.rsqrt(var1 + eps) * g1) + be1   # (C, T)

    # -------- block 2: one batched W2 matmul (explicit bias column add) -----
    pre2 = (jnp.dot(w_all[d:, :c].astype(compute_dtype),
                    y2_all.astype(compute_dtype),
                    preferred_element_type=jnp.float32)
            + w_all[d:, c:c + 1] + penalty)                          # (D, T)
    o2 = []
    for bi in range(n):
        lo = bi * hwp
        o2.append(spc_attention(pre2[:, lo:lo + hwp], xc[:, lo:lo + hwp])
                  + x_aug[:c, lo:lo + hwp])     # fused residual, f32 identity
    o2_all = jnp.concatenate(o2, axis=-1)       # padded lanes exactly 0

    # BN2, applied to locals and stored to out_ref exactly once (no RMW).
    mean2 = jnp.sum(o2_all, axis=-1, keepdims=True) * inv_count
    var2 = jnp.sum(o2_all * o2_all, axis=-1, keepdims=True) * inv_count - mean2 * mean2
    out_ref[...] = (o2_all - mean2) * (lax.rsqrt(var2 + eps) * g2) + be2


# ----------------------------------------------------------------------------
# Glue: conv3d -> banded matrix, parameter init, wrapper.
# ----------------------------------------------------------------------------
def conv_band_matrix(wk, c):
    """wk: (msize, K) depth-conv taps. Returns (msize*c, c) with
       W[m*c + j, i] = wk[m, i - j + K//2] when in range, else 0."""
    msize, K = wk.shape
    pad = K // 2
    j = jnp.arange(c)[:, None]
    i = jnp.arange(c)[None, :]
    k = i - j + pad
    valid = (k >= 0) & (k < K)
    band = jnp.where(valid[None], wk[:, jnp.clip(k, 0, K - 1)], 0.0)  # (msize, c, c)
    return band.reshape(msize * c, c)


def init_params(key, c, msize, K=7):
    """Synthetic init mirroring nn.Conv3d(1, msize, (K,1,1)) + BN defaults."""
    k0, k1, k2, k3 = jax.random.split(key, 4)
    bound = 1.0 / jnp.sqrt(float(K))  # fan_in = 1 * K * 1 * 1
    return dict(
        w0=jax.random.uniform(k0, (msize, K), jnp.float32, -bound, bound),
        b0=jax.random.uniform(k1, (msize,), jnp.float32, -bound, bound),
        w2=jax.random.uniform(k2, (msize, K), jnp.float32, -bound, bound),
        b2=jax.random.uniform(k3, (msize,), jnp.float32, -bound, bound),
        g1=jnp.ones((c,), jnp.float32), be1=jnp.zeros((c,), jnp.float32),
        g2=jnp.ones((c,), jnp.float32), be2=jnp.zeros((c,), jnp.float32),
    )


def spc32_forward(x_nchw, p, *, eps=1e-5, compute_dtype=jnp.bfloat16):
    n, c, h, w = x_nchw.shape
    hw = h * w
    hwp = ((hw + 127) // 128) * 128          # lane-dense spatial axis per batch
    msize = p["w0"].shape[0]
    d = msize * c

    # Lane-dense slab (C, N*HWp): batch blocks along lanes at 128 boundaries,
    # zero in padded lanes; plus a ones row (bias fold + MXU softmax row-sum).
    x = x_nchw.reshape(n, c, hw).astype(jnp.float32)
    x = jnp.pad(x, ((0, 0), (0, 0), (0, hwp - hw)))
    x = jnp.transpose(x, (1, 0, 2)).reshape(c, n * hwp)
    x_aug = jnp.concatenate([x, jnp.ones((1, n * hwp), jnp.float32)], axis=0)

    # Pack both banded conv matrices and both biases into ONE parameter array.
    W0 = conv_band_matrix(p["w0"], c)
    W2 = conv_band_matrix(p["w2"], c)
    B0 = jnp.repeat(p["b0"], c).reshape(d, 1)
    B2 = jnp.repeat(p["b2"], c).reshape(d, 1)
    w_pack = jnp.concatenate(
        [jnp.concatenate([W0, B0], axis=1),
         jnp.concatenate([W2, B2], axis=1)], axis=0)                  # (2D, C+1)
    bn_pack = jnp.stack([p["g1"], p["be1"], p["g2"], p["be2"]], axis=1)  # (C, 4)

    kernel = functools.partial(_spc32_fused_kernel, n=n, hwp=hwp, hw_valid=hw,
                               eps=eps, compute_dtype=compute_dtype)

    # Resident VMEM ~ 2*x + 2*out (double-buffered) + locals: a few KiB here.
    # TODO(synk): for production N/C, grid over batch chunks ("parallel" to use
    # v7x's 2 TensorCores and regain DMA/compute pipelining) with BN stats as
    # cross-chunk partial sums, keeping ~5 resident copies under v7x's 64 MiB.
    out = pl.pallas_call(
        kernel,
        out_shape=jax.ShapeDtypeStruct((c, n * hwp), jnp.float32),
        grid_spec=pltpu.PrefetchScalarGridSpec(
            num_scalar_prefetch=0,
            grid=(1,),
            in_specs=[
                pl.BlockSpec((c + 1, n * hwp), lambda i: (0, 0)),   # x (+ ones row)
                pl.BlockSpec((2 * d, c + 1), lambda i: (0, 0)),     # [W0|b0; W2|b2]
                pl.BlockSpec((c, 4), lambda i: (0, 0)),             # BN gamma/beta
            ],
            out_specs=pl.BlockSpec((c, n * hwp), lambda i: (0, 0)),
        ),
        compiler_params=pltpu.CompilerParams(
            dimension_semantics=("arbitrary",),
        ),
    )(x_aug, w_pack, bn_pack)

    out = out.reshape(c, n, hwp)[:, :, :hw]
    return jnp.transpose(out, (1, 0, 2)).reshape(n, c, h, w)


# ----------------------------------------------------------------------------
# Pure-JAX reference (literal PyTorch formulation) for validation.
# ----------------------------------------------------------------------------
def _conv_depth_ref(y, wk, b):
    n, c, hw = y.shape
    msize, K = wk.shape
    pad = K // 2
    yp = jnp.pad(y, ((0, 0), (pad, pad), (0, 0)))
    acc = jnp.zeros((n, msize, c, hw), jnp.float32) + b[None, :, None, None]
    for k in range(K):
        acc = acc + wk[:, k][None, :, None, None] * yp[:, k:k + c, :][:, None, :, :]
    return acc.reshape(n, msize * c, hw)


def batchnorm_train(x, gamma, beta, eps=1e-5):
    mean = jnp.mean(x, axis=(0, 2), keepdims=True)
    var = jnp.mean((x - mean) ** 2, axis=(0, 2), keepdims=True)
    return (x - mean) * lax.rsqrt(var + eps) * gamma[None, :, None] + beta[None, :, None]


def spc32_reference(x_nchw, p):
    n, c, h, w = x_nchw.shape
    hw = h * w
    x = x_nchw.reshape(n, c, hw).astype(jnp.float32)

    def block(y, wk, b):
        pre = _conv_depth_ref(y, wk, b)
        mask = jax.nn.softmax(pre, axis=-1)
        fk = jnp.einsum('ndp,ncp->ncd', mask, x, precision=lax.Precision.HIGHEST)
        full = jnp.einsum('ncd,ndp->ncdp', fk, mask, precision=lax.Precision.HIGHEST)
        full = jnp.where(full > 0, full, 0.01 * full)   # leaky_relu(0.01)
        return jnp.sum(full, axis=2)

    out = block(x, p["w0"], p["b0"])
    out0 = batchnorm_train(out, p["g1"], p["be1"])
    out = block(out0, p["w2"], p["b2"])
    out = out + x
    out = batchnorm_train(out, p["g2"], p["be2"])
    return out.reshape(n, c, h, w)


if __name__ == "__main__":
    key = jax.random.PRNGKey(0)
    kx, kp = jax.random.split(key)

    # Small shapes consistent with the module: c == outplane (required by
    # BatchNorm2d), spatial 9x9 (spa_size=9), msize downsized 24 -> 4.
    n, c, h, w = 2, 8, 9, 9
    msize = 4

    x = jax.random.normal(kx, (n, c, h, w), jnp.float32)
    params = init_params(kp, c, msize)

    out = jax.jit(spc32_forward)(x, params)
    out = jax.block_until_ready(out)

    ref = spc32_reference(x, params)
    assert out.shape == (n, c, h, w), out.shape
    assert bool(jnp.all(jnp.isfinite(out)))
    max_err = float(jnp.max(jnp.abs(out - ref)))
    assert max_err < 5e-2, f"mismatch vs reference: {max_err}"

    print("KERNEL_OK")
</pallas_src>

<mosaic_0001>
module attributes {stable_mosaic.version = 11 : i64} {
  func.func @_spc32_fused_kernel(%arg0: i32, %arg1: memref<9x256xf32, #tpu.memory_space<vmem>>, %arg2: memref<64x9xf32, #tpu.memory_space<vmem>>, %arg3: memref<8x4xf32, #tpu.memory_space<vmem>>, %arg4: memref<8x256xf32, #tpu.memory_space<vmem>>) attributes {dimension_semantics = [#tpu.dimension_semantics<arbitrary>], iteration_bounds = array<i64: 1>, scalar_prefetch = 0 : i64, scratch_operands = 0 : i64, tpu.core_type = #tpu.core_type<tc>, window_params = [{pipeline_mode = #tpu.pipeline_mode<synchronous>, transform_indices = @transform_0, window_bounds = array<i64: 9, 256>}, {pipeline_mode = #tpu.pipeline_mode<synchronous>, transform_indices = @transform_1, window_bounds = array<i64: 64, 9>}, {pipeline_mode = #tpu.pipeline_mode<synchronous>, transform_indices = @transform_2, window_bounds = array<i64: 8, 4>}, {pipeline_mode = #tpu.pipeline_mode<synchronous>, transform_indices = @transform_3, window_bounds = array<i64: 8, 256>}]} {
    %c0 = arith.constant 0 : index
    %c0_0 = arith.constant 0 : index
    %0 = vector.load %arg1[%c0, %c0_0] : memref<9x256xf32, #tpu.memory_space<vmem>>, vector<9x256xf32>
    %1 = arith.truncf %0 : vector<9x256xf32> to vector<9x256xbf16>
    %c0_1 = arith.constant 0 : index
    %c0_2 = arith.constant 0 : index
    %2 = vector.load %arg2[%c0_1, %c0_2] : memref<64x9xf32, #tpu.memory_space<vmem>>, vector<64x9xf32>
    %c0_3 = arith.constant 0 : index
    %c0_4 = arith.constant 0 : index
    %3 = vector.load %arg3[%c0_3, %c0_4] : memref<8x4xf32, #tpu.memory_space<vmem>>, vector<8x4xf32>
    %4 = vector.extract_strided_slice %3 {offsets = [0, 0], sizes = [8, 1], strides = [1, 1]} : vector<8x4xf32> to vector<8x1xf32>
    %5 = vector.extract_strided_slice %3 {offsets = [0, 1], sizes = [8, 1], strides = [1, 1]} : vector<8x4xf32> to vector<8x1xf32>
    %6 = vector.extract_strided_slice %3 {offsets = [0, 2], sizes = [8, 1], strides = [1, 1]} : vector<8x4xf32> to vector<8x1xf32>
    %7 = vector.extract_strided_slice %3 {offsets = [0, 3], sizes = [8, 1], strides = [1, 1]} : vector<8x4xf32> to vector<8x1xf32>
    %8 = tpu.iota {dimensions = array<i32: 1>} : vector<1x256xi32>
    %c128_i32 = arith.constant 128 : i32
    %c0_i32 = arith.constant 0 : i32
    %9 = arith.cmpi eq, %c128_i32, %c0_i32 : i32
    %c1_i32 = arith.constant 1 : i32
    %10 = arith.select %9, %c1_i32, %c128_i32 : i32
    %11 = vector.broadcast %10 : i32 to vector<1x256xi32>
    %12 = arith.remsi %8, %11 : vector<1x256xi32>
    %c0_i32_5 = arith.constant 0 : i32
    %13 = vector.broadcast %c0_i32_5 : i32 to vector<1x256xi32>
    %14 = arith.cmpi ne, %12, %13 : vector<1x256xi32>
    %c0_i32_6 = arith.constant 0 : i32
    %15 = vector.broadcast %c0_i32_6 : i32 to vector<1x256xi32>
    %16 = arith.cmpi slt, %12, %15 : vector<1x256xi32>
    %c0_i32_7 = arith.constant 0 : i32
    %17 = arith.cmpi slt, %10, %c0_i32_7 : i32
    %18 = vector.broadcast %17 : i1 to vector<1x256xi1>
    %19 = vector.broadcast %18 : vector<1x256xi1> to vector<1x256xi1>
    %20 = arith.xori %16, %19 : vector<1x256xi1>
    %21 = arith.andi %20, %14 : vector<1x256xi1>
    %22 = vector.broadcast %10 : i32 to vector<1x256xi32>
    %23 = arith.addi %12, %22 : vector<1x256xi32>
    %24 = arith.select %21, %23, %12 : vector<1x256xi1>, vector<1x256xi32>
    %c81_i32 = arith.constant 81 : i32
    %25 = vector.broadcast %c81_i32 : i32 to vector<1x256xi32>
    %26 = arith.cmpi slt, %24, %25 : vector<1x256xi32>
    %cst = arith.constant 0.000000e+00 : f32
    %cst_8 = arith.constant -1.000000e+30 : f32
    %27 = vector.broadcast %cst : f32 to vector<1x256xf32>
    %28 = vector.broadcast %cst_8 : f32 to vector<1x256xf32>
    %29 = arith.select %26, %27, %28 : vector<1x256xi1>, vector<1x256xf32>
    %30 = vector.extract_strided_slice %2 {offsets = [0, 0], sizes = [32, 9], strides = [1, 1]} : vector<64x9xf32> to vector<32x9xf32>
    %31 = arith.truncf %30 : vector<32x9xf32> to vector<32x9xbf16>
    %cst_9 = arith.constant dense<0.000000e+00> : vector<32x256xf32>
    %32 = tpu.matmul %31, %1, %cst_9 {dimension_numbers = #tpu.dot_dimension_numbers<[1], [0], [0], [1], [0, 0, 1, 1], [], []>} : vector<32x9xbf16>, vector<9x256xbf16>, vector<32x256xf32> -> vector<32x256xf32>
    %33 = vector.broadcast %29 : vector<1x256xf32> to vector<32x256xf32>
    %34 = arith.addf %32, %33 : vector<32x256xf32>
    %35 = vector.extract_strided_slice %34 {offsets = [0, 0], sizes = [32, 128], strides = [1, 1]} : vector<32x256xf32> to vector<32x128xf32>
    %36 = vector.extract_strided_slice %1 {offsets = [0, 0], sizes = [9, 128], strides = [1, 1]} : vector<9x256xbf16> to vector<9x128xbf16>
    %cst_10 = arith.constant dense<0xFF800000> : vector<32xf32>
    %37 = vector.multi_reduction <maximumf>, %35, %cst_10 [1] : vector<32x128xf32> to vector<32xf32>
    %38 = vector.shape_cast %37 : vector<32xf32> to vector<32x1xf32>
    %39 = vector.broadcast %38 : vector<32x1xf32> to vector<32x128xf32>
    %40 = arith.subf %35, %39 : vector<32x128xf32>
    %41 = math.exp %40 : vector<32x128xf32>
    %42 = arith.truncf %41 : vector<32x128xf32> to vector<32x128xbf16>
    %cst_11 = arith.constant dense<0.000000e+00> : vector<32x9xf32>
    %43 = tpu.matmul %42, %36, %cst_11 {dimension_numbers = #tpu.dot_dimension_numbers<[1], [1], [0], [0], [0, 0, 1, 0], [], []>} : vector<32x128xbf16>, vector<9x128xbf16>, vector<32x9xf32> -> vector<32x9xf32>
    %44 = vector.extract_strided_slice %43 {offsets = [0, 0], sizes = [32, 8], strides = [1, 1]} : vector<32x9xf32> to vector<32x8xf32>
    %45 = vector.extract_strided_slice %43 {offsets = [0, 8], sizes = [32, 1], strides = [1, 1]} : vector<32x9xf32> to vector<32x1xf32>
    %46 = tpu.reciprocal %45 {approx = true} : vector<32x1xf32> -> vector<32x1xf32>
    %cst_12 = arith.constant 0.000000e+00 : f32
    %47 = vector.broadcast %cst_12 : f32 to vector<32x8xf32>
    %48 = arith.cmpf ogt, %44, %47 : vector<32x8xf32>
    %cst_13 = arith.constant 0.00999999977 : f32
    %49 = vector.broadcast %cst_13 : f32 to vector<32x8xf32>
    %50 = arith.mulf %49, %44 : vector<32x8xf32>
    %51 = arith.select %48, %44, %50 : vector<32x8xi1>, vector<32x8xf32>
    %52 = arith.mulf %46, %46 : vector<32x1xf32>
    %53 = vector.broadcast %52 : vector<32x1xf32> to vector<32x8xf32>
    %54 = arith.mulf %51, %53 : vector<32x8xf32>
    %55 = arith.truncf %54 : vector<32x8xf32> to vector<32x8xbf16>
    %cst_14 = arith.constant dense<0.000000e+00> : vector<8x128xf32>
    %56 = tpu.matmul %55, %42, %cst_14 {dimension_numbers = #tpu.dot_dimension_numbers<[0], [0], [1], [1], [0, 1, 1, 1], [], []>} : vector<32x8xbf16>, vector<32x128xbf16>, vector<8x128xf32> -> vector<8x128xf32>
    %57 = vector.extract_strided_slice %34 {offsets = [0, 128], sizes = [32, 128], strides = [1, 1]} : vector<32x256xf32> to vector<32x128xf32>
    %58 = vector.extract_strided_slice %1 {offsets = [0, 128], sizes = [9, 128], strides = [1, 1]} : vector<9x256xbf16> to vector<9x128xbf16>
    %cst_15 = arith.constant dense<0xFF800000> : vector<32xf32>
    %59 = vector.multi_reduction <maximumf>, %57, %cst_15 [1] : vector<32x128xf32> to vector<32xf32>
    %60 = vector.shape_cast %59 : vector<32xf32> to vector<32x1xf32>
    %61 = vector.broadcast %60 : vector<32x1xf32> to vector<32x128xf32>
    %62 = arith.subf %57, %61 : vector<32x128xf32>
    %63 = math.exp %62 : vector<32x128xf32>
    %64 = arith.truncf %63 : vector<32x128xf32> to vector<32x128xbf16>
    %cst_16 = arith.constant dense<0.000000e+00> : vector<32x9xf32>
    %65 = tpu.matmul %64, %58, %cst_16 {dimension_numbers = #tpu.dot_dimension_numbers<[1], [1], [0], [0], [0, 0, 1, 0], [], []>} : vector<32x128xbf16>, vector<9x128xbf16>, vector<32x9xf32> -> vector<32x9xf32>
    %66 = vector.extract_strided_slice %65 {offsets = [0, 0], sizes = [32, 8], strides = [1, 1]} : vector<32x9xf32> to vector<32x8xf32>
    %67 = vector.extract_strided_slice %65 {offsets = [0, 8], sizes = [32, 1], strides = [1, 1]} : vector<32x9xf32> to vector<32x1xf32>
    %68 = tpu.reciprocal %67 {approx = true} : vector<32x1xf32> -> vector<32x1xf32>
    %cst_17 = arith.constant 0.000000e+00 : f32
    %69 = vector.broadcast %cst_17 : f32 to vector<32x8xf32>
    %70 = arith.cmpf ogt, %66, %69 : vector<32x8xf32>
    %cst_18 = arith.constant 0.00999999977 : f32
    %71 = vector.broadcast %cst_18 : f32 to vector<32x8xf32>
    %72 = arith.mulf %71, %66 : vector<32x8xf32>
    %73 = arith.select %70, %66, %72 : vector<32x8xi1>, vector<32x8xf32>
    %74 = arith.mulf %68, %68 : vector<32x1xf32>
    %75 = vector.broadcast %74 : vector<32x1xf32> to vector<32x8xf32>
    %76 = arith.mulf %73, %75 : vector<32x8xf32>
    %77 = arith.truncf %76 : vector<32x8xf32> to vector<32x8xbf16>
    %cst_19 = arith.constant dense<0.000000e+00> : vector<8x128xf32>
    %78 = tpu.matmul %77, %64, %cst_19 {dimension_numbers = #tpu.dot_dimension_numbers<[0], [0], [1], [1], [0, 1, 1, 1], [], []>} : vector<32x8xbf16>, vector<32x128xbf16>, vector<8x128xf32> -> vector<8x128xf32>
    %79 = tpu.concatenate %56, %78 in 1 : vector<8x128xf32>, vector<8x128xf32> -> vector<8x256xf32>
    %cst_20 = arith.constant dense<0.000000e+00> : vector<8xf32>
    %80 = vector.multi_reduction <add>, %79, %cst_20 [1] : vector<8x256xf32> to vector<8xf32>
    %81 = vector.shape_cast %80 : vector<8xf32> to vector<8x1xf32>
    %cst_21 = arith.constant 0.00617283955 : f32
    %82 = vector.broadcast %cst_21 : f32 to vector<8x1xf32>
    %83 = arith.mulf %81, %82 : vector<8x1xf32>
    %84 = arith.mulf %79, %79 : vector<8x256xf32>
    %cst_22 = arith.constant dense<0.000000e+00> : vector<8xf32>
    %85 = vector.multi_reduction <add>, %84, %cst_22 [1] : vector<8x256xf32> to vector<8xf32>
    %86 = vector.shape_cast %85 : vector<8xf32> to vector<8x1xf32>
    %cst_23 = arith.constant 0.00617283955 : f32
    %87 = vector.broadcast %cst_23 : f32 to vector<8x1xf32>
    %88 = arith.mulf %86, %87 : vector<8x1xf32>
    %89 = arith.mulf %83, %83 : vector<8x1xf32>
    %90 = arith.subf %88, %89 : vector<8x1xf32>
    %91 = vector.broadcast %83 : vector<8x1xf32> to vector<8x256xf32>
    %92 = arith.subf %79, %91 : vector<8x256xf32>
    %cst_24 = arith.constant 9.99999974E-6 : f32
    %93 = vector.broadcast %cst_24 : f32 to vector<8x1xf32>
    %94 = arith.addf %90, %93 : vector<8x1xf32>
    %95 = math.rsqrt %94 : vector<8x1xf32>
    %96 = arith.mulf %95, %4 : vector<8x1xf32>
    %97 = vector.broadcast %96 : vector<8x1xf32> to vector<8x256xf32>
    %98 = arith.mulf %92, %97 : vector<8x256xf32>
    %99 = vector.broadcast %5 : vector<8x1xf32> to vector<8x256xf32>
    %100 = arith.addf %98, %99 : vector<8x256xf32>
    %101 = vector.extract_strided_slice %2 {offsets = [32, 0], sizes = [32, 8], strides = [1, 1]} : vector<64x9xf32> to vector<32x8xf32>
    %102 = arith.truncf %101 : vector<32x8xf32> to vector<32x8xbf16>
    %103 = arith.truncf %100 : vector<8x256xf32> to vector<8x256xbf16>
    %cst_25 = arith.constant dense<0.000000e+00> : vector<32x256xf32>
    %104 = tpu.matmul %102, %103, %cst_25 {dimension_numbers = #tpu.dot_dimension_numbers<[1], [0], [0], [1], [0, 0, 1, 1], [], []>} : vector<32x8xbf16>, vector<8x256xbf16>, vector<32x256xf32> -> vector<32x256xf32>
    %105 = vector.extract_strided_slice %2 {offsets = [32, 8], sizes = [32, 1], strides = [1, 1]} : vector<64x9xf32> to vector<32x1xf32>
    %106 = vector.broadcast %105 : vector<32x1xf32> to vector<32x256xf32>
    %107 = arith.addf %104, %106 : vector<32x256xf32>
    %108 = vector.broadcast %29 : vector<1x256xf32> to vector<32x256xf32>
    %109 = arith.addf %107, %108 : vector<32x256xf32>
    %110 = vector.extract_strided_slice %109 {offsets = [0, 0], sizes = [32, 128], strides = [1, 1]} : vector<32x256xf32> to vector<32x128xf32>
    %111 = vector.extract_strided_slice %1 {offsets = [0, 0], sizes = [9, 128], strides = [1, 1]} : vector<9x256xbf16> to vector<9x128xbf16>
    %cst_26 = arith.constant dense<0xFF800000> : vector<32xf32>
    %112 = vector.multi_reduction <maximumf>, %110, %cst_26 [1] : vector<32x128xf32> to vector<32xf32>
    %113 = vector.shape_cast %112 : vector<32xf32> to vector<32x1xf32>
    %114 = vector.broadcast %113 : vector<32x1xf32> to vector<32x128xf32>
    %115 = arith.subf %110, %114 : vector<32x128xf32>
    %116 = math.exp %115 : vector<32x128xf32>
    %117 = arith.truncf %116 : vector<32x128xf32> to vector<32x128xbf16>
    %cst_27 = arith.constant dense<0.000000e+00> : vector<32x9xf32>
    %118 = tpu.matmul %117, %111, %cst_27 {dimension_numbers = #tpu.dot_dimension_numbers<[1], [1], [0], [0], [0, 0, 1, 0], [], []>} : vector<32x128xbf16>, vector<9x128xbf16>, vector<32x9xf32> -> vector<32x9xf32>
    %119 = vector.extract_strided_slice %118 {offsets = [0, 0], sizes = [32, 8], strides = [1, 1]} : vector<32x9xf32> to vector<32x8xf32>
    %120 = vector.extract_strided_slice %118 {offsets = [0, 8], sizes = [32, 1], strides = [1, 1]} : vector<32x9xf32> to vector<32x1xf32>
    %121 = tpu.reciprocal %120 {approx = true} : vector<32x1xf32> -> vector<32x1xf32>
    %cst_28 = arith.constant 0.000000e+00 : f32
    %122 = vector.broadcast %cst_28 : f32 to vector<32x8xf32>
    %123 = arith.cmpf ogt, %119, %122 : vector<32x8xf32>
    %cst_29 = arith.constant 0.00999999977 : f32
    %124 = vector.broadcast %cst_29 : f32 to vector<32x8xf32>
    %125 = arith.mulf %124, %119 : vector<32x8xf32>
    %126 = arith.select %123, %119, %125 : vector<32x8xi1>, vector<32x8xf32>
    %127 = arith.mulf %121, %121 : vector<32x1xf32>
    %128 = vector.broadcast %127 : vector<32x1xf32> to vector<32x8xf32>
    %129 = arith.mulf %126, %128 : vector<32x8xf32>
    %130 = arith.truncf %129 : vector<32x8xf32> to vector<32x8xbf16>
    %cst_30 = arith.constant dense<0.000000e+00> : vector<8x128xf32>
    %131 = tpu.matmul %130, %117, %cst_30 {dimension_numbers = #tpu.dot_dimension_numbers<[0], [0], [1], [1], [0, 1, 1, 1], [], []>} : vector<32x8xbf16>, vector<32x128xbf16>, vector<8x128xf32> -> vector<8x128xf32>
    %132 = vector.extract_strided_slice %0 {offsets = [0, 0], sizes = [8, 128], strides = [1, 1]} : vector<9x256xf32> to vector<8x128xf32>
    %133 = arith.addf %131, %132 : vector<8x128xf32>
    %134 = vector.extract_strided_slice %109 {offsets = [0, 128], sizes = [32, 128], strides = [1, 1]} : vector<32x256xf32> to vector<32x128xf32>
    %135 = vector.extract_strided_slice %1 {offsets = [0, 128], sizes = [9, 128], strides = [1, 1]} : vector<9x256xbf16> to vector<9x128xbf16>
    %cst_31 = arith.constant dense<0xFF800000> : vector<32xf32>
    %136 = vector.multi_reduction <maximumf>, %134, %cst_31 [1] : vector<32x128xf32> to vector<32xf32>
    %137 = vector.shape_cast %136 : vector<32xf32> to vector<32x1xf32>
    %138 = vector.broadcast %137 : vector<32x1xf32> to vector<32x128xf32>
    %139 = arith.subf %134, %138 : vector<32x128xf32>
    %140 = math.exp %139 : vector<32x128xf32>
    %141 = arith.truncf %140 : vector<32x128xf32> to vector<32x128xbf16>
    %cst_32 = arith.constant dense<0.000000e+00> : vector<32x9xf32>
    %142 = tpu.matmul %141, %135, %cst_32 {dimension_numbers = #tpu.dot_dimension_numbers<[1], [1], [0], [0], [0, 0, 1, 0], [], []>} : vector<32x128xbf16>, vector<9x128xbf16>, vector<32x9xf32> -> vector<32x9xf32>
    %143 = vector.extract_strided_slice %142 {offsets = [0, 0], sizes = [32, 8], strides = [1, 1]} : vector<32x9xf32> to vector<32x8xf32>
    %144 = vector.extract_strided_slice %142 {offsets = [0, 8], sizes = [32, 1], strides = [1, 1]} : vector<32x9xf32> to vector<32x1xf32>
    %145 = tpu.reciprocal %144 {approx = true} : vector<32x1xf32> -> vector<32x1xf32>
    %cst_33 = arith.constant 0.000000e+00 : f32
    %146 = vector.broadcast %cst_33 : f32 to vector<32x8xf32>
    %147 = arith.cmpf ogt, %143, %146 : vector<32x8xf32>
    %cst_34 = arith.constant 0.00999999977 : f32
    %148 = vector.broadcast %cst_34 : f32 to vector<32x8xf32>
    %149 = arith.mulf %148, %143 : vector<32x8xf32>
    %150 = arith.select %147, %143, %149 : vector<32x8xi1>, vector<32x8xf32>
    %151 = arith.mulf %145, %145 : vector<32x1xf32>
    %152 = vector.broadcast %151 : vector<32x1xf32> to vector<32x8xf32>
    %153 = arith.mulf %150, %152 : vector<32x8xf32>
    %154 = arith.truncf %153 : vector<32x8xf32> to vector<32x8xbf16>
    %cst_35 = arith.constant dense<0.000000e+00> : vector<8x128xf32>
    %155 = tpu.matmul %154, %141, %cst_35 {dimension_numbers = #tpu.dot_dimension_numbers<[0], [0], [1], [1], [0, 1, 1, 1], [], []>} : vector<32x8xbf16>, vector<32x128xbf16>, vector<8x128xf32> -> vector<8x128xf32>
    %156 = vector.extract_strided_slice %0 {offsets = [0, 128], sizes = [8, 128], strides = [1, 1]} : vector<9x256xf32> to vector<8x128xf32>
    %157 = arith.addf %155, %156 : vector<8x128xf32>
    %158 = tpu.concatenate %133, %157 in 1 : vector<8x128xf32>, vector<8x128xf32> -> vector<8x256xf32>
    %cst_36 = arith.constant dense<0.000000e+00> : vector<8xf32>
    %159 = vector.multi_reduction <add>, %158, %cst_36 [1] : vector<8x256xf32> to vector<8xf32>
    %160 = vector.shape_cast %159 : vector<8xf32> to vector<8x1xf32>
    %cst_37 = arith.constant 0.00617283955 : f32
    %161 = vector.broadcast %cst_37 : f32 to vector<8x1xf32>
    %162 = arith.mulf %160, %161 : vector<8x1xf32>
    %163 = arith.mulf %158, %158 : vector<8x256xf32>
    %cst_38 = arith.constant dense<0.000000e+00> : vector<8xf32>
    %164 = vector.multi_reduction <add>, %163, %cst_38 [1] : vector<8x256xf32> to vector<8xf32>
    %165 = vector.shape_cast %164 : vector<8xf32> to vector<8x1xf32>
    %cst_39 = arith.constant 0.00617283955 : f32
    %166 = vector.broadcast %cst_39 : f32 to vector<8x1xf32>
    %167 = arith.mulf %165, %166 : vector<8x1xf32>
    %168 = arith.mulf %162, %162 : vector<8x1xf32>
    %169 = arith.subf %167, %168 : vector<8x1xf32>
    %170 = vector.broadcast %162 : vector<8x1xf32> to vector<8x256xf32>
    %171 = arith.subf %158, %170 : vector<8x256xf32>
    %cst_40 = arith.constant 9.99999974E-6 : f32
    %172 = vector.broadcast %cst_40 : f32 to vector<8x1xf32>
    %173 = arith.addf %169, %172 : vector<8x1xf32>
    %174 = math.rsqrt %173 : vector<8x1xf32>
    %175 = arith.mulf %174, %6 : vector<8x1xf32>
    %176 = vector.broadcast %175 : vector<8x1xf32> to vector<8x256xf32>
    %177 = arith.mulf %171, %176 : vector<8x256xf32>
    %178 = vector.broadcast %7 : vector<8x1xf32> to vector<8x256xf32>
    %179 = arith.addf %177, %178 : vector<8x256xf32>
    %c0_41 = arith.constant 0 : index
    %c0_42 = arith.constant 0 : index
    %180 = vector.load %arg4[%c0_41, %c0_42] : memref<8x256xf32, #tpu.memory_space<vmem>>, vector<8x256xf32>
    tpu.vector_store %arg4[%c0_41, %c0_42], %179 {strides = array<i32>} : memref<8x256xf32, #tpu.memory_space<vmem>>, vector<8x256xf32>,
    return
  }
  func.func @transform_0(%arg0: i32) -> (i32, i32) {
    %c0_i32 = arith.constant 0 : i32
    %c0_i32_0 = arith.constant 0 : i32
    %c0_i32_1 = arith.constant 0 : i32
    return %c0_i32, %c0_i32_0 : i32, i32
  }
  func.func @transform_1(%arg0: i32) -> (i32, i32) {
    %c0_i32 = arith.constant 0 : i32
    %c0_i32_0 = arith.constant 0 : i32
    %c0_i32_1 = arith.constant 0 : i32
    return %c0_i32, %c0_i32_0 : i32, i32
  }
  func.func @transform_2(%arg0: i32) -> (i32, i32) {
    %c0_i32 = arith.constant 0 : i32
    %c0_i32_0 = arith.constant 0 : i32
    %c0_i32_1 = arith.constant 0 : i32
    return %c0_i32, %c0_i32_0 : i32, i32
  }
  func.func @transform_3(%arg0: i32) -> (i32, i32) {
    %c0_i32 = arith.constant 0 : i32
    %c0_i32_0 = arith.constant 0 : i32
    %c0_i32_1 = arith.constant 0 : i32
    return %c0_i32, %c0_i32_0 : i32, i32
  }
}

</mosaic_0001>

<llo_original>
// kernel: spc32_forward.1
$region0: #{spc32_forward.1}
  #allocation0 [shape = 'u32[]', space=smem, size = 0x4, offset = 0x4, fixed_abs, tag = 'smem constant byte address 0x4 - core index']
  #allocation1 [shape = 'u32[144,128]{1,0:T(1,128)}', space=vmem, size = 0x12000, scoped, tag = 'internal scratch']
  %s0 = inlined_call_operand.vmem [shape: f32[9,256], index: 0, kind: input, shape index: {}]
  %s1 = inlined_call_operand.vmem [shape: f32[64,9], index: 1, kind: input, shape index: {}]
  %s2 = inlined_call_operand.vmem [shape: f32[8,4], index: 2, kind: input, shape index: {}]
  %s3 = inlined_call_operand.vmem [shape: f32[8,256], index: 3, kind: output, shape index: {}]
  %s4 = sld [smem:[#allocation0]]
  $region22: #{spc32_forward.1} parent=0
    _
  %s6 = ssub.s32 1, %s4
  %s7 = scalar_select 0, %s6, %s4
  // Predicated region
  $region2: #{spc32_forward.1} parent=0 // pred_check
    _
  $region3: #{spc32_forward.1} parent=0 // pred_check_branch
    %9 = sbr.rel (0) target = $region5
  $region4: #{spc32_forward.1} parent=0 // pred_region
    _
  $region5: #{spc32_forward.1} parent=0 // pred_fallthru
    _
  // Predicated region
  $region6: #{spc32_forward.1} parent=0 // pred_check
    _
  $region7: #{spc32_forward.1} parent=0 // pred_check_branch
    %11 = sbr.rel (0) target = $region9
  $region8: #{spc32_forward.1} parent=0 // pred_region
    _
  $region9: #{spc32_forward.1} parent=0 // pred_fallthru
    _
  // Predicated region
  $region10: #{spc32_forward.1} parent=0 // pred_check
    _
  $region11: #{spc32_forward.1} parent=0 // pred_check_branch
    %13 = sbr.rel (0) target = $region13
  $region12: #{spc32_forward.1} parent=0 // pred_region
    _
  $region13: #{spc32_forward.1} parent=0 // pred_fallthru
    _
  %v15 = vld [vmem:[%s0] sm:$0xff]
  %v16 = vld [vmem:[%s0 + $0x8] sm:$0xff]
  %v17 = vld [vmem:[%s0 + $0x10] sm:$0x1]
  %v18 = vld [vmem:[%s0 + $0x18] sm:$0x1]
  %v19 = vpack.c.bf16 %v17, %v15
  %v20 = vpack.c.bf16 %v18, %v16
  %v21 = vld [vmem:[%s1] sm:$0xff]
  %v22 = vld [vmem:[%s1 + $0x8] sm:$0xff]
  %v23 = vld [vmem:[%s1 + $0x10] sm:$0xff]
  %v24 = vld [vmem:[%s1 + $0x18] sm:$0xff]
  %v25 = vld [vmem:[%s1 + $0x20] sm:$0xff]
  %v26 = vld [vmem:[%s1 + $0x28] sm:$0xff]
  %v27 = vld [vmem:[%s1 + $0x30] sm:$0xff]
  %v28 = vld [vmem:[%s1 + $0x38] sm:$0xff]
  %v29 = vld [vmem:[%s2] sm:$0xff]
  %v30 = vlaneseq
  %v31 = vand.u32 %v30, 127
  %v32 = vadd.s32 %v31, 128
  %vm33 = vcmp.lt.s32.totalorder %v31, 0
  %v34 = vsub.s32 0, %v31
  %v35 = vsel %vm33, %v34, %v31
  %v36 = vshrl.u32 %v35, 7
  %v37 = vand.u32 %v35, 127
  %v38 = vsub.s32 0, %v37
  %v39 = vsel %vm33, %v38, %v37
  %vm40 = vcmp.lt.s32.totalorder %v32, 0
  %v41 = vsub.s32 0, %v32
  %v42 = vsel %vm40, %v41, %v32
  %v43 = vshrl.u32 %v42, 7
  %v44 = vand.u32 %v42, 127
  %v45 = vsub.s32 0, %v44
  %v46 = vsel %vm40, %v45, %v44
  %vm47 = vcmp.ne.s32.totalorder %v39, 0
  %vm48 = vcmp.ne.s32.totalorder %v46, 0
  %vm49 = vcmp.lt.s32.totalorder %v39, 0
  %vm50 = vcmp.lt.s32.totalorder %v46, 0
  %vm51 = vmand %vm49, %vm47
  %vm52 = vmand %vm50, %vm48
  %v53 = vadd.s32 %v39, 128
  %v54 = vadd.s32 %v46, 128
  %v55 = vsel %vm51, %v53, %v39
  %v56 = vsel %vm52, %v54, %v46
  %vm57 = vcmp.lt.s32.totalorder %v55, 81
  %vm58 = vcmp.lt.s32.totalorder %v56, 81
  %v59 = vsel %vm57, 0.0, -1e+30
  %v60 = vsel %vm58, 0.0, -1e+30
  %v61 = vpack.c.bf16 %v22, %v21
  %v62 = vpack.c.bf16 %v24, %v23
  %vm63 = vcmask 72704
  %v65 = vsel %vm63, %v61, 0
  %v68 = vsel %vm63, %v62, 0
  %vm70 = vcmask 1043456
  %vm71 = vcmask 1044480
  %v72 = vsel %vm70, 4294967295, 65535
  %v73 = vsel %vm71, %v72, 0
  %v75 = vand.u32 %v19, %v73
  %v78 = vand.u32 %v20, %v73
  %80 = vmatprep.subr.bf16.mxu0 %v78
  %81 = vmatpush1.bf16.msra.mxu0 %v75
  %82 = vmatprep.subr.bf16.mxu0 0
  %83 = vmatpush1.bf16.msra.mxu0 0
  %84 = vmatprep.subr.bf16.mxu0 0
  %85 = vmatpush1.bf16.msra.mxu0 0
  %86 = vmatprep.subr.bf16.mxu0 0
  %87 = vmatpush1.bf16.msra.mxu0 0
  %88 = vmatprep.subr.bf16.mxu0 0
  %89 = vmatpush1.bf16.msra.mxu0 0
  %90 = vmatprep.subr.bf16.mxu0 0
  %91 = vmatpush1.bf16.msra.mxu0 0
  %92 = vmatprep.subr.bf16.mxu0 0
  %93 = vmatpush1.bf16.msra.mxu0 0
  %94 = vmatprep.subr.bf16.mxu0 0
  %95 = vmatpush1.bf16.msra.mxu0 0
  %96 = vmatprep.subr.bf16.mxu0 0
  %97 = vmatpush1.bf16.msra.mxu0 0
  %98 = vmatprep.subr.bf16.mxu0 0
  %99 = vmatpush1.bf16.msra.mxu0 0
  %100 = vmatprep.subr.bf16.mxu0 0
  %101 = vmatpush1.bf16.msra.mxu0 0
  %102 = vmatprep.subr.bf16.mxu0 0
  %103 = vmatpush1.bf16.msra.mxu0 0
  %104 = vmatprep.subr.bf16.mxu0 0
  %105 = vmatpush1.bf16.msra.mxu0 0
  %106 = vmatprep.subr.bf16.mxu0 0
  %107 = vmatpush1.bf16.msra.mxu0 0
  %108 = vmatprep.subr.bf16.mxu0 0
  %109 = vmatpush1.bf16.msra.mxu0 0
  %110 = vmatprep.subr.bf16.mxu0 0
  %111 = vmatpush1.bf16.msra.mxu0 0
  %112 = vmatprep.mubr.bf16.mxu0 0
  %113 = vmatmul.mubr.bf16.gmra.mrb[0].mxu0 %v65
  %v114 = vpop.f32.mrb[0].mxu0
  %v115 = vadd.f32 %v59, %v114
  %v116 = vpop.f32.mrb[0].mxu0
  %v117 = vadd.f32 %v60, %v116
  %v118 = vpop.f32.mrb[0].mxu0
  %v119 = vadd.f32 %v59, %v118
  %v120 = vpop.f32.mrb[0].mxu0
  %v121 = vadd.f32 %v60, %v120
  %122 = vmatprep.mubr.bf16.mxu0 0
  %123 = vmatmul.mubr.bf16.gmra.mrb[0].mxu0 %v68
  %v124 = vpop.f32.mrb[0].mxu0
  %v125 = vadd.f32 %v59, %v124
  %v126 = vpop.f32.mrb[0].mxu0
  %v127 = vadd.f32 %v60, %v126
  %v128 = vpop.f32.mrb[0].mxu0
  %v129 = vadd.f32 %v59, %v128
  %v130 = vpop.f32.mrb[0].mxu0
  %v131 = vadd.f32 %v60, %v130
  %132 = vdwg.mxu0
  %133 = vmax.xlane.f32.xlu0 %v115
  %v134 = vpop.xlane.xlu0 %133
  %135 = vmax.xlane.f32.xlu0 %v119
  %v136 = vpop.xlane.xlu0 %135
  %137 = vmax.xlane.f32.xlu0 %v125
  %v138 = vpop.xlane.xlu0 %137
  %139 = vmax.xlane.f32.xlu0 %v129
  %v140 = vpop.xlane.xlu0 %139
  %v141 = vsub.f32 %v115, %v134
  %v142 = vsub.f32 %v119, %v136
  %v143 = vsub.f32 %v125, %v138
  %v144 = vsub.f32 %v129, %v140
  %v145 = vmul.f32 %v141, 1.442695
  %v146 = vpow.pop %v145
  %v147 = vmul.f32 %v142, 1.442695
  %v148 = vpow.pop %v147
  %v149 = vmul.f32 %v143, 1.442695
  %v150 = vpow.pop %v149
  %v151 = vmul.f32 %v144, 1.442695
  %v152 = vpow.pop %v151
  %v153 = vpack.c.bf16 %v148, %v146
  %v154 = vpack.c.bf16 %v152, %v150
  %155 = vmatprep.subr.bf16.mxu0 0
  %156 = vmatpush1.bf16.xpose.msra.mxu0 %v19
  %157 = vmatprep.subr.bf16.mxu0 0
  %158 = vmatpush1.bf16.xpose.msra.mxu0 0
  %159 = vmatprep.subr.bf16.mxu0 0
  %160 = vmatpush1.bf16.xpose.msra.mxu0 0
  %161 = vmatprep.subr.bf16.mxu0 0
  %162 = vmatpush1.bf16.xpose.msra.mxu0 0
  %163 = vmatprep.subr.bf16.mxu0 0
  %164 = vmatpush1.bf16.xpose.msra.mxu0 0
  %165 = vmatprep.subr.bf16.mxu0 0
  %166 = vmatpush1.bf16.xpose.msra.mxu0 0
  %167 = vmatprep.subr.bf16.mxu0 0
  %168 = vmatpush1.bf16.xpose.msra.mxu0 0
  %169 = vmatprep.subr.bf16.mxu0 0
  %170 = vmatpush1.bf16.xpose.msra.mxu0 0
  %171 = vmatprep.subr.bf16.mxu0 0
  %172 = vmatpush1.bf16.xpose.msra.mxu0 0
  %173 = vmatprep.subr.bf16.mxu0 0
  %174 = vmatpush1.bf16.xpose.msra.mxu0 0
  %175 = vmatprep.subr.bf16.mxu0 0
  %176 = vmatpush1.bf16.xpose.msra.mxu0 0
  %177 = vmatprep.subr.bf16.mxu0 0
  %178 = vmatpush1.bf16.xpose.msra.mxu0 0
  %179 = vmatprep.subr.bf16.mxu0 0
  %180 = vmatpush1.bf16.xpose.msra.mxu0 0
  %181 = vmatprep.subr.bf16.mxu0 0
  %182 = vmatpush1.bf16.xpose.msra.mxu0 0
  %183 = vmatprep.subr.bf16.mxu0 0
  %184 = vmatpush1.bf16.xpose.msra.mxu0 0
  %185 = vmatprep.subr.bf16.mxu0 0
  %186 = vmatpush1.bf16.xpose.msra.mxu0 0
  %187 = vmatprep.mubr.bf16.mxu0 0
  %188 = vmatmul.mubr.bf16.gmra.mrb[0].mxu0 %v153
  %v189 = vpop.f32.mrb[0].mxu0
  %v190 = vadd.f32 0.0, %v189
  %v191 = vpop.f32.mrb[0].mxu0
  %v192 = vpop.f32.mrb[0].mxu0
  %v193 = vadd.f32 0.0, %v192
  %v194 = vpop.f32.mrb[0].mxu0
  %195 = vmatprep.mubr.bf16.mxu0 0
  %196 = vmatmul.mubr.bf16.gmra.mrb[0].mxu0 %v154
  %v197 = vpop.f32.mrb[0].mxu0
  %v198 = vadd.f32 0.0, %v197
  %v199 = vpop.f32.mrb[0].mxu0
  %v200 = vpop.f32.mrb[0].mxu0
  %v201 = vadd.f32 0.0, %v200
  %v202 = vpop.f32.mrb[0].mxu0
  %203 = vdwg.mxu0
  %v204 = vrcp.pop %v190
  %v205 = vrcp.pop %v193
  %v206 = vrcp.pop %v198
  %v207 = vrcp.pop %v201
  %vm208 = vcmp.gt.f32.partialorder %v190, 0.0
  %vm209 = vcmp.gt.f32.partialorder %v193, 0.0
  %vm210 = vcmp.gt.f32.partialorder %v198, 0.0
  %vm211 = vcmp.gt.f32.partialorder %v201, 0.0
  %v212 = vmul.f32 %v190, 0.01
  %v213 = vmul.f32 %v193, 0.01
  %v214 = vmul.f32 %v198, 0.01
  %v215 = vmul.f32 %v201, 0.01
  %v216 = vsel %vm208, %v190, %v212
  %v217 = vsel %vm209, %v193, %v213
  %v218 = vsel %vm210, %v198, %v214
  %v219 = vsel %vm211, %v201, %v215
  %v220 = vmul.f32 %v204, %v204
  %v221 = vmul.f32 %v205, %v205
  %v222 = vmul.f32 %v206, %v206
  %v223 = vmul.f32 %v207, %v207
  %225 = vset.pattern.permute.xlu0 8
  %226 = vperm.xlu0 %225, %v220
  %v227 = vpop.permute.xlu0 %226
  %230 = vset.pattern.permute.xlu0 8
  %231 = vperm.xlu0 %230, %v221
  %v232 = vpop.permute.xlu0 %231
  %235 = vset.pattern.permute.xlu0 8
  %236 = vperm.xlu0 %235, %v222
  %v237 = vpop.permute.xlu0 %236
  %240 = vset.pattern.permute.xlu0 8
  %241 = vperm.xlu0 %240, %v223
  %v242 = vpop.permute.xlu0 %241
  %v244 = vmul.f32 %v216, %v227
  %v245 = vmul.f32 %v217, %v232
  %v246 = vmul.f32 %v218, %v237
  %v247 = vmul.f32 %v219, %v242
  %v248 = vpack.c.bf16 %v245, %v244
  %v249 = vpack.c.bf16 %v247, %v246
  %250 = vxpose.xlu0.c.b16.start [1/8] %v248, 128
  %251 = vxpose.xlu0.c.b16.cont [2/8] %v249, 128
  %252 = vxpose.xlu0.c.b16.cont [3/8] 0, 128
  %253 = vxpose.xlu0.c.b16.cont [4/8] 0, 128
  %254 = vxpose.xlu0.c.b16.cont [5/8] 0, 128
  %255 = vxpose.xlu0.c.b16.cont [6/8] 0, 128
  %256 = vxpose.xlu0.c.b16.cont [7/8] 0, 128
  %257 = vxpose.xlu0.c.b16.end [8/8] 0, 128
  %v258 = vpop.trf.xlu0
  %v259 = vpop.trf.xlu0
  %v260 = vpop.trf.xlu0
  %v261 = vpop.trf.xlu0
  %v262 = vpop.trf.xlu0
  %v263 = vpop.trf.xlu0
  %v264 = vpop.trf.xlu0
  %v265 = vpop.trf.xlu0
  %vm266 = vcmask 261120
  %v268 = vsel %vm266, %v258, 0
  %270 = vmatprep.subr.bf16.mxu0 0
  %271 = vmatpush1.bf16.msra.mxu0 %v153
  %272 = vmatprep.subr.bf16.mxu0 0
  %273 = vmatpush1.bf16.msra.mxu0 %v154
  %274 = vmatprep.subr.bf16.mxu0 0
  %275 = vmatpush1.bf16.msra.mxu0 0
  %276 = vmatprep.subr.bf16.mxu0 0
  %277 = vmatpush1.bf16.msra.mxu0 0
  %278 = vmatprep.subr.bf16.mxu0 0
  %279 = vmatpush1.bf16.msra.mxu0 0
  %280 = vmatprep.subr.bf16.mxu0 0
  %281 = vmatpush1.bf16.msra.mxu0 0
  %282 = vmatprep.subr.bf16.mxu0 0
  %283 = vmatpush1.bf16.msra.mxu0 0
  %284 = vmatprep.subr.bf16.mxu0 0
  %285 = vmatpush1.bf16.msra.mxu0 0
  %286 = vmatprep.subr.bf16.mxu0 0
  %287 = vmatpush1.bf16.msra.mxu0 0
  %288 = vmatprep.subr.bf16.mxu0 0
  %289 = vmatpush1.bf16.msra.mxu0 0
  %290 = vmatprep.subr.bf16.mxu0 0
  %291 = vmatpush1.bf16.msra.mxu0 0
  %292 = vmatprep.subr.bf16.mxu0 0
  %293 = vmatpush1.bf16.msra.mxu0 0
  %294 = vmatprep.subr.bf16.mxu0 0
  %295 = vmatpush1.bf16.msra.mxu0 0
  %296 = vmatprep.subr.bf16.mxu0 0
  %297 = vmatpush1.bf16.msra.mxu0 0
  %298 = vmatprep.subr.bf16.mxu0 0
  %299 = vmatpush1.bf16.msra.mxu0 0
  %300 = vmatprep.subr.bf16.mxu0 0
  %301 = vmatpush1.bf16.msra.mxu0 0
  %302 = vmatprep.mubr.bf16.mxu0 0
  %303 = vmatmul.mubr.bf16.gmra.mrb[0].mxu0 %v268
  %v304 = vpop.f32.mrb[0].mxu0
  %v305 = vadd.f32 0.0, %v304
  %v306 = vpop.f32.mrb[0].mxu0
  %v307 = vpop.f32.mrb[0].mxu0
  %v308 = vpop.f32.mrb[0].mxu0
  %309 = vdwg.mxu0
  %310 = vmax.xlane.f32.xlu0 %v117
  %v311 = vpop.xlane.xlu0 %310
  %312 = vmax.xlane.f32.xlu0 %v121
  %v313 = vpop.xlane.xlu0 %312
  %314 = vmax.xlane.f32.xlu0 %v127
  %v315 = vpop.xlane.xlu0 %314
  %316 = vmax.xlane.f32.xlu0 %v131
  %v317 = vpop.xlane.xlu0 %316
  %v318 = vsub.f32 %v117, %v311
  %v319 = vsub.f32 %v121, %v313
  %v320 = vsub.f32 %v127, %v315
  %v321 = vsub.f32 %v131, %v317
  %v322 = vmul.f32 %v318, 1.442695
  %v323 = vpow.pop %v322
  %v324 = vmul.f32 %v319, 1.442695
  %v325 = vpow.pop %v324
  %v326 = vmul.f32 %v320, 1.442695
  %v327 = vpow.pop %v326
  %v328 = vmul.f32 %v321, 1.442695
  %v329 = vpow.pop %v328
  %v330 = vpack.c.bf16 %v325, %v323
  %v331 = vpack.c.bf16 %v329, %v327
  %332 = vmatprep.subr.bf16.mxu0 0
  %333 = vmatpush1.bf16.xpose.msra.mxu0 %v20
  %334 = vmatprep.subr.bf16.mxu0 0
  %335 = vmatpush1.bf16.xpose.msra.mxu0 0
  %336 = vmatprep.subr.bf16.mxu0 0
  %337 = vmatpush1.bf16.xpose.msra.mxu0 0
  %338 = vmatprep.subr.bf16.mxu0 0
  %339 = vmatpush1.bf16.xpose.msra.mxu0 0
  %340 = vmatprep.subr.bf16.mxu0 0
  %341 = vmatpush1.bf16.xpose.msra.mxu0 0
  %342 = vmatprep.subr.bf16.mxu0 0
  %343 = vmatpush1.bf16.xpose.msra.mxu0 0
  %344 = vmatprep.subr.bf16.mxu0 0
  %345 = vmatpush1.bf16.xpose.msra.mxu0 0
  %346 = vmatprep.subr.bf16.mxu0 0
  %347 = vmatpush1.bf16.xpose.msra.mxu0 0
  %348 = vmatprep.subr.bf16.mxu0 0
  %349 = vmatpush1.bf16.xpose.msra.mxu0 0
  %350 = vmatprep.subr.bf16.mxu0 0
  %351 = vmatpush1.bf16.xpose.msra.mxu0 0
  %352 = vmatprep.subr.bf16.mxu0 0
  %353 = vmatpush1.bf16.xpose.msra.mxu0 0
  %354 = vmatprep.subr.bf16.mxu0 0
  %355 = vmatpush1.bf16.xpose.msra.mxu0 0
  %356 = vmatprep.subr.bf16.mxu0 0
  %357 = vmatpush1.bf16.xpose.msra.mxu0 0
  %358 = vmatprep.subr.bf16.mxu0 0
  %359 = vmatpush1.bf16.xpose.msra.mxu0 0
  %360 = vmatprep.subr.bf16.mxu0 0
  %361 = vmatpush1.bf16.xpose.msra.mxu0 0
  %362 = vmatprep.subr.bf16.mxu0 0
  %363 = vmatpush1.bf16.xpose.msra.mxu0 0
  %364 = vmatprep.mubr.bf16.mxu0 0
  %365 = vmatmul.mubr.bf16.gmra.mrb[0].mxu0 %v330
  %v366 = vpop.f32.mrb[0].mxu0
  %v367 = vadd.f32 0.0, %v366
  %v368 = vpop.f32.mrb[0].mxu0
  %v369 = vpop.f32.mrb[0].mxu0
  %v370 = vadd.f32 0.0, %v369
  %v371 = vpop.f32.mrb[0].mxu0
  %372 = vmatprep.mubr.bf16.mxu0 0
  %373 = vmatmul.mubr.bf16.gmra.mrb[0].mxu0 %v331
  %v374 = vpop.f32.mrb[0].mxu0
  %v375 = vadd.f32 0.0, %v374
  %v376 = vpop.f32.mrb[0].mxu0
  %v377 = vpop.f32.mrb[0].mxu0
  %v378 = vadd.f32 0.0, %v377
  %v379 = vpop.f32.mrb[0].mxu0
  %380 = vdwg.mxu0
  %v381 = vrcp.pop %v367
  %v382 = vrcp.pop %v370
  %v383 = vrcp.pop %v375
  %v384 = vrcp.pop %v378
  %vm385 = vcmp.gt.f32.partialorder %v367, 0.0
  %vm386 = vcmp.gt.f32.partialorder %v370, 0.0
  %vm387 = vcmp.gt.f32.partialorder %v375, 0.0
  %vm388 = vcmp.gt.f32.partialorder %v378, 0.0
  %v389 = vmul.f32 %v367, 0.01
  %v390 = vmul.f32 %v370, 0.01
  %v391 = vmul.f32 %v375, 0.01
  %v392 = vmul.f32 %v378, 0.01
  %v393 = vsel %vm385, %v367, %v389
  %v394 = vsel %vm386, %v370, %v390
  %v395 = vsel %vm387, %v375, %v391
  %v396 = vsel %vm388, %v378, %v392
  %v397 = vmul.f32 %v381, %v381
  %v398 = vmul.f32 %v382, %v382
  %v399 = vmul.f32 %v383, %v383
  %v400 = vmul.f32 %v384, %v384
  %402 = vset.pattern.permute.xlu0 8
  %403 = vperm.xlu0 %402, %v397
  %v404 = vpop.permute.xlu0 %403
  %407 = vset.pattern.permute.xlu0 8
  %408 = vperm.xlu0 %407, %v398
  %v409 = vpop.permute.xlu0 %408
  %412 = vset.pattern.permute.xlu0 8
  %413 = vperm.xlu0 %412, %v399
  %v414 = vpop.permute.xlu0 %413
  %417 = vset.pattern.permute.xlu0 8
  %418 = vperm.xlu0 %417, %v400
  %v419 = vpop.permute.xlu0 %418
  %v421 = vmul.f32 %v393, %v404
  %v422 = vmul.f32 %v394, %v409
  %v423 = vmul.f32 %v395, %v414
  %v424 = vmul.f32 %v396, %v419
  %v425 = vpack.c.bf16 %v422, %v421
  %v426 = vpack.c.bf16 %v424, %v423
  %427 = vxpose.xlu0.c.b16.start [1/8] %v425, 128
  %428 = vxpose.xlu0.c.b16.cont [2/8] %v426, 128
  %429 = vxpose.xlu0.c.b16.cont [3/8] 0, 128
  %430 = vxpose.xlu0.c.b16.cont [4/8] 0, 128
  %431 = vxpose.xlu0.c.b16.cont [5/8] 0, 128
  %432 = vxpose.xlu0.c.b16.cont [6/8] 0, 128
  %433 = vxpose.xlu0.c.b16.cont [7/8] 0, 128
  %434 = vxpose.xlu0.c.b16.end [8/8] 0, 128
  %v435 = vpop.trf.xlu0
  %v436 = vpop.trf.xlu0
  %v437 = vpop.trf.xlu0
  %v438 = vpop.trf.xlu0
  %v439 = vpop.trf.xlu0
  %v440 = vpop.trf.xlu0
  %v441 = vpop.trf.xlu0
  %v442 = vpop.trf.xlu0
  %v444 = vsel %vm266, %v435, 0
  %446 = vmatprep.subr.bf16.mxu0 0
  %447 = vmatpush1.bf16.msra.mxu0 %v330
  %448 = vmatprep.subr.bf16.mxu0 0
  %449 = vmatpush1.bf16.msra.mxu0 %v331
  %450 = vmatprep.subr.bf16.mxu0 0
  %451 = vmatpush1.bf16.msra.mxu0 0
  %452 = vmatprep.subr.bf16.mxu0 0
  %453 = vmatpush1.bf16.msra.mxu0 0
  %454 = vmatprep.subr.bf16.mxu0 0
  %455 = vmatpush1.bf16.msra.mxu0 0
  %456 = vmatprep.subr.bf16.mxu0 0
  %457 = vmatpush1.bf16.msra.mxu0 0
  %458 = vmatprep.subr.bf16.mxu0 0
  %459 = vmatpush1.bf16.msra.mxu0 0
  %460 = vmatprep.subr.bf16.mxu0 0
  %461 = vmatpush1.bf16.msra.mxu0 0
  %462 = vmatprep.subr.bf16.mxu0 0
  %463 = vmatpush1.bf16.msra.mxu0 0
  %464 = vmatprep.subr.bf16.mxu0 0
  %465 = vmatpush1.bf16.msra.mxu0 0
  %466 = vmatprep.subr.bf16.mxu0 0
  %467 = vmatpush1.bf16.msra.mxu0 0
  %468 = vmatprep.subr.bf16.mxu0 0
  %469 = vmatpush1.bf16.msra.mxu0 0
  %470 = vmatprep.subr.bf16.mxu0 0
  %471 = vmatpush1.bf16.msra.mxu0 0
  %472 = vmatprep.subr.bf16.mxu0 0
  %473 = vmatpush1.bf16.msra.mxu0 0
  %474 = vmatprep.subr.bf16.mxu0 0
  %475 = vmatpush1.bf16.msra.mxu0 0
  %476 = vmatprep.subr.bf16.mxu0 0
  %477 = vmatpush1.bf16.msra.mxu0 0
  %478 = vmatprep.mubr.bf16.mxu0 0
  %479 = vmatmul.mubr.bf16.gmra.mrb[0].mxu0 %v444
  %v480 = vpop.f32.mrb[0].mxu0
  %v481 = vadd.f32 0.0, %v480
  %v482 = vpop.f32.mrb[0].mxu0
  %v483 = vpop.f32.mrb[0].mxu0
  %v484 = vpop.f32.mrb[0].mxu0
  %485 = vdwg.mxu0
  %v486 = vadd.f32 %v305, %v481
  %487 = vadd.xlane.f32.xlu0 %v486
  %v488 = vpop.xlane.xlu0 %487
  %v489 = vmul.f32 %v488, 0.0061728396
  %v490 = vmul.f32 %v305, %v305
  %v491 = vmul.f32 %v481, %v481
  %v492 = vadd.f32 %v490, %v491
  %493 = vadd.xlane.f32.xlu0 %v492
  %v494 = vpop.xlane.xlu0 %493
  %v495 = vmul.f32 %v494, 0.0061728396
  %v496 = vmul.f32 %v489, %v489
  %v497 = vsub.f32 %v495, %v496
  %v498 = vsub.f32 %v305, %v489
  %v499 = vsub.f32 %v481, %v489
  %v500 = vadd.f32 %v497, 1e-05
  %v501 = vrsqrt.pop %v500
  %v502 = vmul.f32 %v501, %v29
  %504 = vset.pattern.permute.xlu0 0
  %505 = vperm.xlu0 %504, %v502
  %v506 = vpop.permute.xlu0 %505
  %v508 = vmul.f32 %v498, %v506
  %v509 = vmul.f32 %v499, %v506
  %511 = vset.pattern.permute.xlu0 1
  %512 = vperm.xlu0 %511, %v29
  %v513 = vpop.permute.xlu0 %512
  %v515 = vadd.f32 %v508, %v513
  %v516 = vadd.f32 %v509, %v513
  %v517 = vpack.c.bf16 %v26, %v25
  %v518 = vpack.c.bf16 %v28, %v27
  %v519 = vpack.c.bf16 %v515, %v515
  %v520 = vpack.c.bf16 %v516, %v516
  %522 = vset.pattern.permute.xlu0 8
  %523 = vperm.xlu0 %522, %v25
  %v524 = vpop.permute.xlu0 %523
  %527 = vset.pattern.permute.xlu0 8
  %528 = vperm.xlu0 %527, %v26
  %v529 = vpop.permute.xlu0 %528
  %532 = vset.pattern.permute.xlu0 8
  %533 = vperm.xlu0 %532, %v27
  %v534 = vpop.permute.xlu0 %533
  %537 = vset.pattern.permute.xlu0 8
  %538 = vperm.xlu0 %537, %v28
  %v539 = vpop.permute.xlu0 %538
  %vm541 = vcmask 64512
  %v543 = vsel %vm541, %v517, 0
  %v546 = vsel %vm541, %v518, 0
  %v549 = vsel %vm70, %v519, 0
  %v552 = vsel %vm70, %v520, 0
  %554 = vmatprep.subr.bf16.mxu0 %v552
  %555 = vmatpush1.bf16.msra.mxu0 %v549
  %556 = vmatprep.subr.bf16.mxu0 0
  %557 = vmatpush1.bf16.msra.mxu0 0
  %558 = vmatprep.subr.bf16.mxu0 0
  %559 = vmatpush1.bf16.msra.mxu0 0
  %560 = vmatprep.subr.bf16.mxu0 0
  %561 = vmatpush1.bf16.msra.mxu0 0
  %562 = vmatprep.subr.bf16.mxu0 0
  %563 = vmatpush1.bf16.msra.mxu0 0
  %564 = vmatprep.subr.bf16.mxu0 0
  %565 = vmatpush1.bf16.msra.mxu0 0
  %566 = vmatprep.subr.bf16.mxu0 0
  %567 = vmatpush1.bf16.msra.mxu0 0
  %568 = vmatprep.subr.bf16.mxu0 0
  %569 = vmatpush1.bf16.msra.mxu0 0
  %570 = vmatprep.subr.bf16.mxu0 0
  %571 = vmatpush1.bf16.msra.mxu0 0
  %572 = vmatprep.subr.bf16.mxu0 0
  %573 = vmatpush1.bf16.msra.mxu0 0
  %574 = vmatprep.subr.bf16.mxu0 0
  %575 = vmatpush1.bf16.msra.mxu0 0
  %576 = vmatprep.subr.bf16.mxu0 0
  %577 = vmatpush1.bf16.msra.mxu0 0
  %578 = vmatprep.subr.bf16.mxu0 0
  %579 = vmatpush1.bf16.msra.mxu0 0
  %580 = vmatprep.subr.bf16.mxu0 0
  %581 = vmatpush1.bf16.msra.mxu0 0
  %582 = vmatprep.subr.bf16.mxu0 0
  %583 = vmatpush1.bf16.msra.mxu0 0
  %584 = vmatprep.subr.bf16.mxu0 0
  %585 = vmatpush1.bf16.msra.mxu0 0
  %586 = vmatprep.mubr.bf16.mxu0 0
  %587 = vmatmul.mubr.bf16.gmra.mrb[0].mxu0 %v543
  %v588 = vpop.f32.mrb[0].mxu0
  %v589 = vadd.f32 %v524, %v588
  %v590 = vpop.f32.mrb[0].mxu0
  %v591 = vadd.f32 %v524, %v590
  %v592 = vpop.f32.mrb[0].mxu0
  %v593 = vadd.f32 %v529, %v592
  %v594 = vpop.f32.mrb[0].mxu0
  %v595 = vadd.f32 %v529, %v594
  %596 = vmatprep.mubr.bf16.mxu0 0
  %597 = vmatmul.mubr.bf16.gmra.mrb[0].mxu0 %v546
  %v598 = vpop.f32.mrb[0].mxu0
  %v599 = vadd.f32 %v534, %v598
  %v600 = vpop.f32.mrb[0].mxu0
  %v601 = vadd.f32 %v534, %v600
  %v602 = vpop.f32.mrb[0].mxu0
  %v603 = vadd.f32 %v539, %v602
  %v604 = vpop.f32.mrb[0].mxu0
  %v605 = vadd.f32 %v539, %v604
  %606 = vdwg.mxu0
  %v607 = vadd.f32 %v589, %v59
  %v608 = vadd.f32 %v591, %v60
  %v609 = vadd.f32 %v593, %v59
  %v610 = vadd.f32 %v595, %v60
  %v611 = vadd.f32 %v599, %v59
  %v612 = vadd.f32 %v601, %v60
  %v613 = vadd.f32 %v603, %v59
  %v614 = vadd.f32 %v605, %v60
  %615 = vmax.xlane.f32.xlu0 %v607
  %v616 = vpop.xlane.xlu0 %615
  %617 = vmax.xlane.f32.xlu0 %v609
  %v618 = vpop.xlane.xlu0 %617
  %619 = vmax.xlane.f32.xlu0 %v611
  %v620 = vpop.xlane.xlu0 %619
  %621 = vmax.xlane.f32.xlu0 %v613
  %v622 = vpop.xlane.xlu0 %621
  %v623 = vsub.f32 %v607, %v616
  %v624 = vsub.f32 %v609, %v618
  %v625 = vsub.f32 %v611, %v620
  %v626 = vsub.f32 %v613, %v622
  %v627 = vmul.f32 %v623, 1.442695
  %v628 = vpow.pop %v627
  %v629 = vmul.f32 %v624, 1.442695
  %v630 = vpow.pop %v629
  %v631 = vmul.f32 %v625, 1.442695
  %v632 = vpow.pop %v631
  %v633 = vmul.f32 %v626, 1.442695
  %v634 = vpow.pop %v633
  %v635 = vpack.c.bf16 %v630, %v628
  %v636 = vpack.c.bf16 %v634, %v632
  %637 = vmatprep.subr.bf16.mxu0 0
  %638 = vmatpush1.bf16.xpose.msra.mxu0 %v19
  %639 = vmatprep.subr.bf16.mxu0 0
  %640 = vmatpush1.bf16.xpose.msra.mxu0 0
  %641 = vmatprep.subr.bf16.mxu0 0
  %642 = vmatpush1.bf16.xpose.msra.mxu0 0
  %643 = vmatprep.subr.bf16.mxu0 0
  %644 = vmatpush1.bf16.xpose.msra.mxu0 0
  %645 = vmatprep.subr.bf16.mxu0 0
  %646 = vmatpush1.bf16.xpose.msra.mxu0 0
  %647 = vmatprep.subr.bf16.mxu0 0
  %648 = vmatpush1.bf16.xpose.msra.mxu0 0
  %649 = vmatprep.subr.bf16.mxu0 0
  %650 = vmatpush1.bf16.xpose.msra.mxu0 0
  %651 = vmatprep.subr.bf16.mxu0 0
  %652 = vmatpush1.bf16.xpose.msra.mxu0 0
  %653 = vmatprep.subr.bf16.mxu0 0
  %654 = vmatpush1.bf16.xpose.msra.mxu0 0
  %655 = vmatprep.subr.bf16.mxu0 0
  %656 = vmatpush1.bf16.xpose.msra.mxu0 0
  %657 = vmatprep.subr.bf16.mxu0 0
  %658 = vmatpush1.bf16.xpose.msra.mxu0 0
  %659 = vmatprep.subr.bf16.mxu0 0
  %660 = vmatpush1.bf16.xpose.msra.mxu0 0
  %661 = vmatprep.subr.bf16.mxu0 0
  %662 = vmatpush1.bf16.xpose.msra.mxu0 0
  %663 = vmatprep.subr.bf16.mxu0 0
  %664 = vmatpush1.bf16.xpose.msra.mxu0 0
  %665 = vmatprep.subr.bf16.mxu0 0
  %666 = vmatpush1.bf16.xpose.msra.mxu0 0
  %667 = vmatprep.subr.bf16.mxu0 0
  %668 = vmatpush1.bf16.xpose.msra.mxu0 0
  %669 = vmatprep.mubr.bf16.mxu0 0
  %670 = vmatmul.mubr.bf16.gmra.mrb[0].mxu0 %v635
  %v671 = vpop.f32.mrb[0].mxu0
  %v672 = vadd.f32 0.0, %v671
  %v673 = vpop.f32.mrb[0].mxu0
  %v674 = vpop.f32.mrb[0].mxu0
  %v675 = vadd.f32 0.0, %v674
  %v676 = vpop.f32.mrb[0].mxu0
  %677 = vmatprep.mubr.bf16.mxu0 0
  %678 = vmatmul.mubr.bf16.gmra.mrb[0].mxu0 %v636
  %v679 = vpop.f32.mrb[0].mxu0
  %v680 = vadd.f32 0.0, %v679
  %v681 = vpop.f32.mrb[0].mxu0
  %v682 = vpop.f32.mrb[0].mxu0
  %v683 = vadd.f32 0.0, %v682
  %v684 = vpop.f32.mrb[0].mxu0
  %685 = vdwg.mxu0
  %v686 = vrcp.pop %v672
  %v687 = vrcp.pop %v675
  %v688 = vrcp.pop %v680
  %v689 = vrcp.pop %v683
  %vm690 = vcmp.gt.f32.partialorder %v672, 0.0
  %vm691 = vcmp.gt.f32.partialorder %v675, 0.0
  %vm692 = vcmp.gt.f32.partialorder %v680, 0.0
  %vm693 = vcmp.gt.f32.partialorder %v683, 0.0
  %v694 = vmul.f32 %v672, 0.01
  %v695 = vmul.f32 %v675, 0.01
  %v696 = vmul.f32 %v680, 0.01
  %v697 = vmul.f32 %v683, 0.01
  %v698 = vsel %vm690, %v672, %v694
  %v699 = vsel %vm691, %v675, %v695
  %v700 = vsel %vm692, %v680, %v696
  %v701 = vsel %vm693, %v683, %v697
  %v702 = vmul.f32 %v686, %v686
  %v703 = vmul.f32 %v687, %v687
  %v704 = vmul.f32 %v688, %v688
  %v705 = vmul.f32 %v689, %v689
  %707 = vset.pattern.permute.xlu0 8
  %708 = vperm.xlu0 %707, %v702
  %v709 = vpop.permute.xlu0 %708
  %712 = vset.pattern.permute.xlu0 8
  %713 = vperm.xlu0 %712, %v703
  %v714 = vpop.permute.xlu0 %713
  %717 = vset.pattern.permute.xlu0 8
  %718 = vperm.xlu0 %717, %v704
  %v719 = vpop.permute.xlu0 %718
  %722 = vset.pattern.permute.xlu0 8
  %723 = vperm.xlu0 %722, %v705
  %v724 = vpop.permute.xlu0 %723
  %v726 = vmul.f32 %v698, %v709
  %v727 = vmul.f32 %v699, %v714
  %v728 = vmul.f32 %v700, %v719
  %v729 = vmul.f32 %v701, %v724
  %v730 = vpack.c.bf16 %v727, %v726
  %v731 = vpack.c.bf16 %v729, %v728
  %732 = vxpose.xlu0.c.b16.start [1/8] %v730, 128
  %733 = vxpose.xlu0.c.b16.cont [2/8] %v731, 128
  %734 = vxpose.xlu0.c.b16.cont [3/8] 0, 128
  %735 = vxpose.xlu0.c.b16.cont [4/8] 0, 128
  %736 = vxpose.xlu0.c.b16.cont [5/8] 0, 128
  %737 = vxpose.xlu0.c.b16.cont [6/8] 0, 128
  %738 = vxpose.xlu0.c.b16.cont [7/8] 0, 128
  %739 = vxpose.xlu0.c.b16.end [8/8] 0, 128
  %v740 = vpop.trf.xlu0
  %v741 = vpop.trf.xlu0
  %v742 = vpop.trf.xlu0
  %v743 = vpop.trf.xlu0
  %v744 = vpop.trf.xlu0
  %v745 = vpop.trf.xlu0
  %v746 = vpop.trf.xlu0
  %v747 = vpop.trf.xlu0
  %v749 = vsel %vm266, %v740, 0
  %751 = vmatprep.subr.bf16.mxu0 0
  %752 = vmatpush1.bf16.msra.mxu0 %v635
  %753 = vmatprep.subr.bf16.mxu0 0
  %754 = vmatpush1.bf16.msra.mxu0 %v636
  %755 = vmatprep.subr.bf16.mxu0 0
  %756 = vmatpush1.bf16.msra.mxu0 0
  %757 = vmatprep.subr.bf16.mxu0 0
  %758 = vmatpush1.bf16.msra.mxu0 0
  %759 = vmatprep.subr.bf16.mxu0 0
  %760 = vmatpush1.bf16.msra.mxu0 0
  %761 = vmatprep.subr.bf16.mxu0 0
  %762 = vmatpush1.bf16.msra.mxu0 0
  %763 = vmatprep.subr.bf16.mxu0 0
  %764 = vmatpush1.bf16.msra.mxu0 0
  %765 = vmatprep.subr.bf16.mxu0 0
  %766 = vmatpush1.bf16.msra.mxu0 0
  %767 = vmatprep.subr.bf16.mxu0 0
  %768 = vmatpush1.bf16.msra.mxu0 0
  %769 = vmatprep.subr.bf16.mxu0 0
  %770 = vmatpush1.bf16.msra.mxu0 0
  %771 = vmatprep.subr.bf16.mxu0 0
  %772 = vmatpush1.bf16.msra.mxu0 0
  %773 = vmatprep.subr.bf16.mxu0 0
  %774 = vmatpush1.bf16.msra.mxu0 0
  %775 = vmatprep.subr.bf16.mxu0 0
  %776 = vmatpush1.bf16.msra.mxu0 0
  %777 = vmatprep.subr.bf16.mxu0 0
  %778 = vmatpush1.bf16.msra.mxu0 0
  %779 = vmatprep.subr.bf16.mxu0 0
  %780 = vmatpush1.bf16.msra.mxu0 0
  %781 = vmatprep.subr.bf16.mxu0 0
  %782 = vmatpush1.bf16.msra.mxu0 0
  %783 = vmatprep.mubr.bf16.mxu0 0
  %784 = vmatmul.mubr.bf16.gmra.mrb[0].mxu0 %v749
  %v785 = vpop.f32.mrb[0].mxu0
  %v786 = vadd.f32 %v15, %v785
  %v787 = vpop.f32.mrb[0].mxu0
  %v788 = vpop.f32.mrb[0].mxu0
  %v789 = vpop.f32.mrb[0].mxu0
  %790 = vdwg.mxu0
  %791 = vmax.xlane.f32.xlu0 %v608
  %v792 = vpop.xlane.xlu0 %791
  %793 = vmax.xlane.f32.xlu0 %v610
  %v794 = vpop.xlane.xlu0 %793
  %795 = vmax.xlane.f32.xlu0 %v612
  %v796 = vpop.xlane.xlu0 %795
  %797 = vmax.xlane.f32.xlu0 %v614
  %v798 = vpop.xlane.xlu0 %797
  %v799 = vsub.f32 %v608, %v792
  %v800 = vsub.f32 %v610, %v794
  %v801 = vsub.f32 %v612, %v796
  %v802 = vsub.f32 %v614, %v798
  %v803 = vmul.f32 %v799, 1.442695
  %v804 = vpow.pop %v803
  %v805 = vmul.f32 %v800, 1.442695
  %v806 = vpow.pop %v805
  %v807 = vmul.f32 %v801, 1.442695
  %v808 = vpow.pop %v807
  %v809 = vmul.f32 %v802, 1.442695
  %v810 = vpow.pop %v809
  %v811 = vpack.c.bf16 %v806, %v804
  %v812 = vpack.c.bf16 %v810, %v808
  %813 = vmatprep.subr.bf16.mxu0 0
  %814 = vmatpush1.bf16.xpose.msra.mxu0 %v20
  %815 = vmatprep.subr.bf16.mxu0 0
  %816 = vmatpush1.bf16.xpose.msra.mxu0 0
  %817 = vmatprep.subr.bf16.mxu0 0
  %818 = vmatpush1.bf16.xpose.msra.mxu0 0
  %819 = vmatprep.subr.bf16.mxu0 0
  %820 = vmatpush1.bf16.xpose.msra.mxu0 0
  %821 = vmatprep.subr.bf16.mxu0 0
  %822 = vmatpush1.bf16.xpose.msra.mxu0 0
  %823 = vmatprep.subr.bf16.mxu0 0
  %824 = vmatpush1.bf16.xpose.msra.mxu0 0
  %825 = vmatprep.subr.bf16.mxu0 0
  %826 = vmatpush1.bf16.xpose.msra.mxu0 0
  %827 = vmatprep.subr.bf16.mxu0 0
  %828 = vmatpush1.bf16.xpose.msra.mxu0 0
  %829 = vmatprep.subr.bf16.mxu0 0
  %830 = vmatpush1.bf16.xpose.msra.mxu0 0
  %831 = vmatprep.subr.bf16.mxu0 0
  %832 = vmatpush1.bf16.xpose.msra.mxu0 0
  %833 = vmatprep.subr.bf16.mxu0 0
  %834 = vmatpush1.bf16.xpose.msra.mxu0 0
  %835 = vmatprep.subr.bf16.mxu0 0
  %836 = vmatpush1.bf16.xpose.msra.mxu0 0
  %837 = vmatprep.subr.bf16.mxu0 0
  %838 = vmatpush1.bf16.xpose.msra.mxu0 0
  %839 = vmatprep.subr.bf16.mxu0 0
  %840 = vmatpush1.bf16.xpose.msra.mxu0 0
  %841 = vmatprep.subr.bf16.mxu0 0
  %842 = vmatpush1.bf16.xpose.msra.mxu0 0
  %843 = vmatprep.subr.bf16.mxu0 0
  %844 = vmatpush1.bf16.xpose.msra.mxu0 0
  %845 = vmatprep.mubr.bf16.mxu0 0
  %846 = vmatmul.mubr.bf16.gmra.mrb[0].mxu0 %v811
  %v847 = vpop.f32.mrb[0].mxu0
  %v848 = vadd.f32 0.0, %v847
  %v849 = vpop.f32.mrb[0].mxu0
  %v850 = vpop.f32.mrb[0].mxu0
  %v851 = vadd.f32 0.0, %v850
  %v852 = vpop.f32.mrb[0].mxu0
  %853 = vmatprep.mubr.bf16.mxu0 0
  %854 = vmatmul.mubr.bf16.gmra.mrb[0].mxu0 %v812
  %v855 = vpop.f32.mrb[0].mxu0
  %v856 = vadd.f32 0.0, %v855
  %v857 = vpop.f32.mrb[0].mxu0
  %v858 = vpop.f32.mrb[0].mxu0
  %v859 = vadd.f32 0.0, %v858
  %v860 = vpop.f32.mrb[0].mxu0
  %861 = vdwg.mxu0
  %v862 = vrcp.pop %v848
  %v863 = vrcp.pop %v851
  %v864 = vrcp.pop %v856
  %v865 = vrcp.pop %v859
  %vm866 = vcmp.gt.f32.partialorder %v848, 0.0
  %vm867 = vcmp.gt.f32.partialorder %v851, 0.0
  %vm868 = vcmp.gt.f32.partialorder %v856, 0.0
  %vm869 = vcmp.gt.f32.partialorder %v859, 0.0
  %v870 = vmul.f32 %v848, 0.01
  %v871 = vmul.f32 %v851, 0.01
  %v872 = vmul.f32 %v856, 0.01
  %v873 = vmul.f32 %v859, 0.01
  %v874 = vsel %vm866, %v848, %v870
  %v875 = vsel %vm867, %v851, %v871
  %v876 = vsel %vm868, %v856, %v872
  %v877 = vsel %vm869, %v859, %v873
  %v878 = vmul.f32 %v862, %v862
  %v879 = vmul.f32 %v863, %v863
  %v880 = vmul.f32 %v864, %v864
  %v881 = vmul.f32 %v865, %v865
  %883 = vset.pattern.permute.xlu0 8
  %884 = vperm.xlu0 %883, %v878
  %v885 = vpop.permute.xlu0 %884
  %888 = vset.pattern.permute.xlu0 8
  %889 = vperm.xlu0 %888, %v879
  %v890 = vpop.permute.xlu0 %889
  %893 = vset.pattern.permute.xlu0 8
  %894 = vperm.xlu0 %893, %v880
  %v895 = vpop.permute.xlu0 %894
  %898 = vset.pattern.permute.xlu0 8
  %899 = vperm.xlu0 %898, %v881
  %v900 = vpop.permute.xlu0 %899
  %v902 = vmul.f32 %v874, %v885
  %v903 = vmul.f32 %v875, %v890
  %v904 = vmul.f32 %v876, %v895
  %v905 = vmul.f32 %v877, %v900
  %v906 = vpack.c.bf16 %v903, %v902
  %v907 = vpack.c.bf16 %v905, %v904
  %908 = vxpose.xlu0.c.b16.start [1/8] %v906, 128
  %909 = vxpose.xlu0.c.b16.cont [2/8] %v907, 128
  %910 = vxpose.xlu0.c.b16.cont [3/8] 0, 128
  %911 = vxpose.xlu0.c.b16.cont [4/8] 0, 128
  %912 = vxpose.xlu0.c.b16.cont [5/8] 0, 128
  %913 = vxpose.xlu0.c.b16.cont [6/8] 0, 128
  %914 = vxpose.xlu0.c.b16.cont [7/8] 0, 128
  %915 = vxpose.xlu0.c.b16.end [8/8] 0, 128
  %v916 = vpop.trf.xlu0
  %v917 = vpop.trf.xlu0
  %v918 = vpop.trf.xlu0
  %v919 = vpop.trf.xlu0
  %v920 = vpop.trf.xlu0
  %v921 = vpop.trf.xlu0
  %v922 = vpop.trf.xlu0
  %v923 = vpop.trf.xlu0
  %v925 = vsel %vm266, %v916, 0
  %927 = vmatprep.subr.bf16.mxu0 0
  %928 = vmatpush1.bf16.msra.mxu0 %v811
  %929 = vmatprep.subr.bf16.mxu0 0
  %930 = vmatpush1.bf16.msra.mxu0 %v812
  %931 = vmatprep.subr.bf16.mxu0 0
  %932 = vmatpush1.bf16.msra.mxu0 0
  %933 = vmatprep.subr.bf16.mxu0 0
  %934 = vmatpush1.bf16.msra.mxu0 0
  %935 = vmatprep.subr.bf16.mxu0 0
  %936 = vmatpush1.bf16.msra.mxu0 0
  %937 = vmatprep.subr.bf16.mxu0 0
  %938 = vmatpush1.bf16.msra.mxu0 0
  %939 = vmatprep.subr.bf16.mxu0 0
  %940 = vmatpush1.bf16.msra.mxu0 0
  %941 = vmatprep.subr.bf16.mxu0 0
  %942 = vmatpush1.bf16.msra.mxu0 0
  %943 = vmatprep.subr.bf16.mxu0 0
  %944 = vmatpush1.bf16.msra.mxu0 0
  %945 = vmatprep.subr.bf16.mxu0 0
  %946 = vmatpush1.bf16.msra.mxu0 0
  %947 = vmatprep.subr.bf16.mxu0 0
  %948 = vmatpush1.bf16.msra.mxu0 0
  %949 = vmatprep.subr.bf16.mxu0 0
  %950 = vmatpush1.bf16.msra.mxu0 0
  %951 = vmatprep.subr.bf16.mxu0 0
  %952 = vmatpush1.bf16.msra.mxu0 0
  %953 = vmatprep.subr.bf16.mxu0 0
  %954 = vmatpush1.bf16.msra.mxu0 0
  %955 = vmatprep.subr.bf16.mxu0 0
  %956 = vmatpush1.bf16.msra.mxu0 0
  %957 = vmatprep.subr.bf16.mxu0 0
  %958 = vmatpush1.bf16.msra.mxu0 0
  %959 = vmatprep.mubr.bf16.mxu0 0
  %960 = vmatmul.mubr.bf16.gmra.mrb[0].mxu0 %v925
  %v961 = vpop.f32.mrb[0].mxu0
  %v962 = vadd.f32 %v16, %v961
  %v963 = vpop.f32.mrb[0].mxu0
  %v964 = vpop.f32.mrb[0].mxu0
  %v965 = vpop.f32.mrb[0].mxu0
  %966 = vdwg.mxu0
  %v967 = vadd.f32 %v786, %v962
  %968 = vadd.xlane.f32.xlu0 %v967
  %v969 = vpop.xlane.xlu0 %968
  %v970 = vmul.f32 %v969, 0.0061728396
  %v971 = vmul.f32 %v786, %v786
  %v972 = vmul.f32 %v962, %v962
  %v973 = vadd.f32 %v971, %v972
  %974 = vadd.xlane.f32.xlu0 %v973
  %v975 = vpop.xlane.xlu0 %974
  %v976 = vmul.f32 %v975, 0.0061728396
  %v977 = vmul.f32 %v970, %v970
  %v978 = vsub.f32 %v976, %v977
  %v979 = vsub.f32 %v786, %v970
  %v980 = vsub.f32 %v962, %v970
  %v981 = vadd.f32 %v978, 1e-05
  %v982 = vrsqrt.pop %v981
  %v983 = vmul.f32 %v982, %v29
  %985 = vset.pattern.permute.xlu0 2
  %986 = vperm.xlu0 %985, %v983
  %v987 = vpop.permute.xlu0 %986
  %v989 = vmul.f32 %v979, %v987
  %v990 = vmul.f32 %v980, %v987
  %991 = vset.pattern.permute.xlu0 3
  %992 = vperm.xlu0 %991, %v29
  %v993 = vpop.permute.xlu0 %992
  %v995 = vadd.f32 %v989, %v993
  %v996 = vadd.f32 %v990, %v993
  %997 = vst [vmem:[%s3] sm:$0xff] %v995
  %998 = vst [vmem:[%s3 + $0x8] sm:$0xff] %v996
  // Predicated region
  $region14: #{spc32_forward.1} parent=0 // pred_check
    _
  $region15: #{spc32_forward.1} parent=0 // pred_check_branch
    %1000 = sbr.rel (0) target = $region17
  $region16: #{spc32_forward.1} parent=0 // pred_region
    _
  $region17: #{spc32_forward.1} parent=0 // pred_fallthru
    _
  // Predicated region
  $region18: #{spc32_forward.1} parent=0 // pred_check
    _
  $region19: #{spc32_forward.1} parent=0 // pred_check_branch
    %1002 = sbr.rel (0) target = $region21
  $region20: #{spc32_forward.1} parent=0 // pred_region
    _
  $region21: #{spc32_forward.1} parent=0 // pred_fallthru
    _

</llo_original>
